<compile_context>
chip_gen: v7x
topology: tpu7x:2x2x1
jax: 0.10.0
libtpu: 0.0.40
codegen_flags: <defaults>
</compile_context>

<pallas_src>
import math

import jax
import jax.numpy as jnp
from jax.experimental import pallas as pl
from jax.experimental.pallas import tpu as pltpu


def _round_up(a: int, b: int) -> int:
    return (a + b - 1) // b * b


def _drop_path_kernel(x_ref, s_ref, o_ref):
    # x_ref / o_ref: (TILE_R, LANE) tile of the flattened activation slab.
    # s_ref:         (TILE_R, 1) f32 per-row scale in {0, 1/keep_prob}; broadcasts over lanes.
    x = x_ref[...]
    o_ref[...] = (x.astype(jnp.float32) * s_ref[...]).astype(o_ref.dtype)


def drop_path_pallas(x, drop_prob: float, training: bool, key):
    """DropPath forward. x: (B, ...) float array (e.g. NCHW)."""
    if drop_prob == 0.0 or not training:
        return x
    keep_prob = 1.0 - drop_prob

    B = x.shape[0]
    N = int(math.prod(x.shape[1:]))  # per-sample element count
    itemsize = jnp.dtype(x.dtype).itemsize
    SUBLANE = {4: 8, 2: 16, 1: 32}.get(itemsize, 8)

    # Per-sample keep mask -> scale in {0, 1/keep_prob}  (tiny glue, not the hot path).
    u = jax.random.uniform(key, (B,), dtype=jnp.float32)
    scale = jnp.floor(keep_prob + u) * (1.0 / keep_prob)  # f32[B]

    # Lane-dense layout: widest LANE (<=1024, multiple of 128) dividing N -> zero-copy
    # reshape.  Otherwise fall back to a per-sample pad to a 128 multiple.
    LANE = 0
    for cand in (1024, 512, 256, 128):
        if N % cand == 0:
            LANE = cand
            break

    xf = x.reshape(B, N)
    if LANE == 0:
        # TODO(synk): the unaligned tail could be handled in-kernel (pl.ANY + manual
        # DMA of the remainder) instead of this pad/un-pad HBM round trip.
        LANE = min(512, _round_up(N, 128))
        N_pad = _round_up(N, LANE)
        xf = jnp.pad(xf, ((0, 0), (0, N_pad - N)))
    else:
        N_pad = N

    rows_per_sample = N_pad // LANE
    total_rows = B * rows_per_sample
    xs = xf.reshape(total_rows, LANE)  # bitcast (row-major) -> no data movement

    # Per-row scale vector (total_rows, 1) — negligible size, tiles with the data slab.
    scale_rows = jnp.repeat(scale, rows_per_sample).reshape(total_rows, 1)

    # Row tiling: target ~2 MiB tiles, sublane-aligned; ragged last tile is masked by
    # Pallas, so total_rows need not be a multiple of TILE_R.
    TARGET_TILE_BYTES = 2 * 1024 * 1024
    target_rows = _round_up(max(SUBLANE, TARGET_TILE_BYTES // (LANE * itemsize)), SUBLANE)
    if total_rows > target_rows:
        TILE_R = target_rows
    elif total_rows >= 2 * SUBLANE and total_rows % (2 * SUBLANE) == 0:
        TILE_R = total_rows // 2  # >=2 parallel blocks so both v7x TensorCores get work
    else:
        TILE_R = total_rows       # single block spanning the full dim (always legal)
    grid = (pl.cdiv(total_rows, TILE_R),)

    tile_bytes = TILE_R * LANE * itemsize
    # in + out, double-buffered, plus headroom for the scale blocks / misc.
    vmem_limit = int(min(max(8 << 20, 4 * tile_bytes + (2 << 20)), 64 << 20))

    out = pl.pallas_call(
        _drop_path_kernel,
        out_shape=jax.ShapeDtypeStruct((total_rows, LANE), x.dtype),
        grid=grid,
        in_specs=[
            pl.BlockSpec((TILE_R, LANE), lambda t: (t, 0)),
            pl.BlockSpec((TILE_R, 1), lambda t: (t, 0)),
        ],
        out_specs=pl.BlockSpec((TILE_R, LANE), lambda t: (t, 0)),
        compiler_params=pltpu.CompilerParams(
            dimension_semantics=("parallel",),
            vmem_limit_bytes=vmem_limit,
        ),
    )(xs, scale_rows)

    if N_pad != N:
        out = out.reshape(B, N_pad)[:, :N]
    return out.reshape(x.shape)


def drop_path_ref(x, drop_prob: float, training: bool, key):
    """Pure-JAX reference mirroring the PyTorch code (same randoms as the kernel)."""
    if drop_prob == 0.0 or not training:
        return x
    keep_prob = 1.0 - drop_prob
    u = jax.random.uniform(key, (x.shape[0],), dtype=jnp.float32)
    mask = jnp.floor(keep_prob + u).reshape((x.shape[0],) + (1,) * (x.ndim - 1))
    return x / keep_prob * mask.astype(x.dtype)


if __name__ == "__main__":
    key = jax.random.PRNGKey(0)
    k_x, k_drop, k_x2, k_drop2, k_x3, k_drop3 = jax.random.split(key, 6)

    # --- main case: NCHW, aligned per-sample size (C*H*W = 1024, zero-copy path) ---
    B, C, H, W = 2, 4, 16, 16
    x = jax.random.normal(k_x, (B, C, H, W), dtype=jnp.float32)
    drop_prob = 0.5

    out_train = jax.block_until_ready(drop_path_pallas(x, drop_prob, True, k_drop))
    ref_train = drop_path_ref(x, drop_prob, True, k_drop)
    assert out_train.shape == x.shape and out_train.dtype == x.dtype
    assert jnp.allclose(out_train, ref_train, atol=1e-6, rtol=1e-6)

    # eval path: identity (matches PyTorch early-return)
    out_eval = jax.block_until_ready(drop_path_pallas(x, drop_prob, False, k_drop))
    assert jnp.array_equal(out_eval, x)

    # --- unaligned case: exercises the lane-pad fallback path (N = 105) ---
    x2 = jax.random.normal(k_x2, (2, 3, 7, 5), dtype=jnp.float32)
    out2 = jax.block_until_ready(drop_path_pallas(x2, 0.2, True, k_drop2))
    ref2 = drop_path_ref(x2, 0.2, True, k_drop2)
    assert out2.shape == x2.shape and out2.dtype == x2.dtype
    assert jnp.allclose(out2, ref2, atol=1e-6, rtol=1e-5)

    # --- multi-block case: rows from several samples share a tile (grid > 1) ---
    x3 = jax.random.normal(k_x3, (4, 8, 64, 64), dtype=jnp.float32)
    out3 = jax.block_until_ready(drop_path_pallas(x3, 0.3, True, k_drop3))
    ref3 = drop_path_ref(x3, 0.3, True, k_drop3)
    assert jnp.allclose(out3, ref3, atol=1e-6, rtol=1e-5)

    print("KERNEL_OK")
</pallas_src>

<mosaic_0001>
module attributes {stable_mosaic.version = 11 : i64} {
  func.func @_drop_path_kernel(%arg0: i32, %arg1: memref<2x1024xf32, #tpu.memory_space<vmem>>, %arg2: memref<2x1xf32, #tpu.memory_space<vmem>>, %arg3: memref<2x1024xf32, #tpu.memory_space<vmem>>) attributes {dimension_semantics = [#tpu.dimension_semantics<parallel>], iteration_bounds = array<i64: 1>, scalar_prefetch = 0 : i64, scratch_operands = 0 : i64, tpu.core_type = #tpu.core_type<tc>, window_params = [{transform_indices = @transform_0, window_bounds = array<i64: 2, 1024>}, {transform_indices = @transform_1, window_bounds = array<i64: 2, 1>}, {transform_indices = @transform_2, window_bounds = array<i64: 2, 1024>}]} {
    %c0 = arith.constant 0 : index
    %c0_0 = arith.constant 0 : index
    %0 = vector.load %arg1[%c0, %c0_0] : memref<2x1024xf32, #tpu.memory_space<vmem>>, vector<2x1024xf32>
    %c0_1 = arith.constant 0 : index
    %c0_2 = arith.constant 0 : index
    %1 = vector.load %arg2[%c0_1, %c0_2] : memref<2x1xf32, #tpu.memory_space<vmem>>, vector<2x1xf32>
    %2 = vector.broadcast %1 : vector<2x1xf32> to vector<2x1024xf32>
    %3 = arith.mulf %0, %2 : vector<2x1024xf32>
    %c0_3 = arith.constant 0 : index
    %c0_4 = arith.constant 0 : index
    %4 = vector.load %arg3[%c0_3, %c0_4] : memref<2x1024xf32, #tpu.memory_space<vmem>>, vector<2x1024xf32>
    tpu.vector_store %arg3[%c0_3, %c0_4], %3 {strides = array<i32>} : memref<2x1024xf32, #tpu.memory_space<vmem>>, vector<2x1024xf32>,
    return
  }
  func.func @transform_0(%arg0: i32) -> (i32, i32) {
    %c0_i32 = arith.constant 0 : i32
    %c0_i32_0 = arith.constant 0 : i32
    return %arg0, %c0_i32 : i32, i32
  }
  func.func @transform_1(%arg0: i32) -> (i32, i32) {
    %c0_i32 = arith.constant 0 : i32
    %c0_i32_0 = arith.constant 0 : i32
    return %arg0, %c0_i32 : i32, i32
  }
  func.func @transform_2(%arg0: i32) -> (i32, i32) {
    %c0_i32 = arith.constant 0 : i32
    %c0_i32_0 = arith.constant 0 : i32
    return %arg0, %c0_i32 : i32, i32
  }
}

</mosaic_0001>

<llo_original>
// kernel: tpu_custom_call.1
$region0: #{tpu_custom_call.1}
  #allocation0 [shape = 'u32[]', space=smem, size = 0x4, offset = 0x4, fixed_abs, tag = 'smem constant byte address 0x4 - core index']
  #allocation1 [shape = 'u32[144,128]{1,0:T(1,128)}', space=vmem, size = 0x12000, scoped, tag = 'internal scratch']
  %s0 = inlined_call_operand.hbm [shape: f32[2,1024], index: 0, kind: input, shape index: {}]
  %s1 = inlined_call_operand.vmem [shape: f32[2,1], index: 1, kind: input, shape index: {}]
  %s2 = inlined_call_operand.hbm [shape: f32[2,1024], index: 2, kind: output, shape index: {}]
  %s3 = sld [smem:[#allocation0]]
  $region22: #{tpu_custom_call.1} parent=0
    _
  %s5 = ssub.s32 1, %s3
  %s6 = scalar_select 0, %s5, %s3
  $region1: #{tpu_custom_call.1} parent=0
    #allocation2 [shape = 'u8[8192]{0}', space=vmem, size = 0x2000, scoped, tag = 'input window, operand 0, single buffered']
    #allocation3 [shape = 's32[1]{0}', space=sflag, size = 0x4, scoped, tag = 'scoped memory for tpu_custom_call.1']
    #allocation4 [shape = 's32[1]{0}', space=sflag, size = 0x4, scoped, tag = 'scoped memory for tpu_custom_call.1']
    #allocation5 [shape = 'u8[8192]{0}', space=vmem, size = 0x2000, scoped, tag = 'output window, operand 0, single buffered']
    %7 = vsyncpa [#allocation3], 0
    %8 = vsyncpa [#allocation4], 0
    // Predicated region
    $region2: #{tpu_custom_call.1} parent=1 // pred_check
      _
    $region3: #{tpu_custom_call.1} parent=1 // pred_check_branch
      %10 = sbr.rel (0) target = $region5
    $region4: #{tpu_custom_call.1} parent=1 // pred_region
      %s12 = ssub.s32 256, 256
      %13 = vsyncadd [#allocation3], %s12
      %s15 = sshll.u32 [#allocation2], 4
      %s16 = int_to_ptr.vmem [resolvable:$true] %s15
      %18 = dma.hbm_to_vmem [thread:$0]  %s0, 256, %s16, [#allocation3]
    $region5: #{tpu_custom_call.1} parent=1 // pred_fallthru
      _
    // Predicated region
    $region6: #{tpu_custom_call.1} parent=1 // pred_check
      _
    $region7: #{tpu_custom_call.1} parent=1 // pred_check_branch
      %20 = sbr.rel (0) target = $region9
    $region8: #{tpu_custom_call.1} parent=1 // pred_region
      _
    $region9: #{tpu_custom_call.1} parent=1 // pred_fallthru
      _
    // Predicated region
    $region10: #{tpu_custom_call.1} parent=1 // pred_check
      _
    $region11: #{tpu_custom_call.1} parent=1 // pred_check_branch
      %22 = sbr.rel (0) target = $region13
    $region12: #{tpu_custom_call.1} parent=1 // pred_region
      %23 = dma.done [#allocation3], 256
    $region13: #{tpu_custom_call.1} parent=1 // pred_fallthru
      _
    %v24 = vld [vmem:[#allocation2] sm:$0xff]
    %v25 = vld [vmem:[#allocation2 + $0x8] sm:$0xff]
    %v26 = vld [vmem:[%s1] sm:$0x3]
    %28 = vset.pattern.permute.xlu0 0
    %29 = vperm.xlu0 %28, %v26
    %v30 = vpop.permute.xlu0 %29
    %v32 = vunpack.c.l.s4 269488144
    %v33 = vunpack.c.0.s8 %v32
    %v34 = vlaneseq
    %v35 = vshrl.u32 %v34, 7
    %v36 = vsub.s32 %v33, %v35
    %v37 = vrot.slane %v30, %v36
    %v39 = vmul.f32 %v24, %v37
    %v40 = vmul.f32 %v25, %v37
    %41 = vst [vmem:[#allocation5] sm:$0xff] %v39
    %42 = vst [vmem:[#allocation5 + $0x8] sm:$0xff] %v40
    // Predicated region
    $region14: #{tpu_custom_call.1} parent=1 // pred_check
      _
    $region15: #{tpu_custom_call.1} parent=1 // pred_check_branch
      %44 = sbr.rel (0) target = $region17
    $region16: #{tpu_custom_call.1} parent=1 // pred_region
      %s46 = ssub.s32 256, 256
      %47 = vsyncadd [#allocation4], %s46
      %s49 = sshll.u32 [#allocation5], 4
      %s50 = int_to_ptr.vmem [resolvable:$true] %s49
      %52 = dma.vmem_to_hbm [thread:$0]  %s50, 256, %s2, [#allocation4]
    $region17: #{tpu_custom_call.1} parent=1 // pred_fallthru
      _
    // Predicated region
    $region18: #{tpu_custom_call.1} parent=1 // pred_check
      _
    $region19: #{tpu_custom_call.1} parent=1 // pred_check_branch
      %54 = sbr.rel (0) target = $region21
    $region20: #{tpu_custom_call.1} parent=1 // pred_region
      %55 = dma.done [#allocation4], 256
    $region21: #{tpu_custom_call.1} parent=1 // pred_fallthru
      _
    %56 = vsyncpa [#allocation3], 1
    %57 = vsyncpa [#allocation4], 1

</llo_original>
